<compile_context>
chip_gen: v7x
topology: tpu7x:2x2x1
jax: 0.10.0
libtpu: 0.0.40
codegen_flags: <defaults>
</compile_context>

<pallas_src>
import jax
import jax.numpy as jnp
from jax.experimental import pallas as pl
from jax.experimental.pallas import tpu as pltpu

PAD = 128        # padded feature width (lane / MXU aligned)
MAX_TB = 512     # max batch-tile width (lanes of the transposed activations)

IN_DIM = 3
HID = 124
OUT_DIM = 1


def _round_up(n, m):
    return ((n + m - 1) // m) * m


def _mlp_kernel(x_ref, w_ref, b_ref, o_ref):
    """One batch tile. Activations are feature-major: h has shape (PAD, TB).

    x_ref: (IN_DIM, TB)      -- unpadded input features for this batch tile
    w_ref: (4, PAD, PAD)     -- W_k in PyTorch (out, in) layout, zero padded
    b_ref: (PAD, 4)          -- column k is bias of layer k, zero padded
    o_ref: (1, TB)           -- lane-dense output row for this batch tile
    """
    x = x_ref[...]          # (3, TB)
    b = b_ref[...]          # (PAD, 4)
    w1 = w_ref[0]           # (PAD, PAD); only cols 0..2 are nonzero

    # Layer 1: K=3 contraction done as three VPU rank-1 updates (avoids a K=3 MXU dot).
    h = (b[:, 0:1]
         + w1[:, 0:1] * x[0:1, :]
         + w1[:, 1:2] * x[1:2, :]
         + w1[:, 2:3] * x[2:3, :])          # (PAD, TB)
    h = jnp.maximum(h, 0.0)

    # Layers 2 & 3: full (PAD,PAD) @ (PAD,TB) MXU matmuls with f32 accumulation.
    h = jnp.maximum(
        jnp.dot(w_ref[1], h, preferred_element_type=jnp.float32) + b[:, 1:2], 0.0)
    h = jnp.maximum(
        jnp.dot(w_ref[2], h, preferred_element_type=jnp.float32) + b[:, 2:3], 0.0)

    # Layer 4: W4 is zero-padded to (PAD, PAD) (only row 0 nonzero); the MXU has
    # plenty of slack here and this keeps the output lane-dense with no transpose.
    y = jnp.dot(w_ref[3], h, preferred_element_type=jnp.float32)   # (PAD, TB)
    o_ref[...] = (y[0:1, :] + b[0:1, 3:4]).astype(o_ref.dtype)


def pack_params(params):
    """One-time packing of PyTorch-layout params ((out,in) weights, (out,) biases)
    into the fused, zero-padded kernel operands. Call once, outside the forward."""
    (w1, b1), (w2, b2), (w3, b3), (w4, b4) = params
    w_stack = jnp.zeros((4, PAD, PAD), jnp.float32)
    w_stack = w_stack.at[0, :HID, :IN_DIM].set(w1.astype(jnp.float32))
    w_stack = w_stack.at[1, :HID, :HID].set(w2.astype(jnp.float32))
    w_stack = w_stack.at[2, :HID, :HID].set(w3.astype(jnp.float32))
    w_stack = w_stack.at[3, :OUT_DIM, :HID].set(w4.astype(jnp.float32))
    b_stack = jnp.zeros((PAD, 4), jnp.float32)
    b_stack = b_stack.at[:HID, 0].set(b1.astype(jnp.float32))
    b_stack = b_stack.at[:HID, 1].set(b2.astype(jnp.float32))
    b_stack = b_stack.at[:HID, 2].set(b3.astype(jnp.float32))
    b_stack = b_stack.at[:OUT_DIM, 3].set(b4.astype(jnp.float32))
    return w_stack, b_stack


@jax.jit
def simple_net_forward(x, packed):
    """x: [B, 3] float32 -> [B, 1] float32 (matches SimpleNet.forward)."""
    w_stack, b_stack = packed
    B = x.shape[0]

    # Batch tile: as large as MAX_TB, multiple of 128 (lane-dense output tiles).
    tb = min(MAX_TB, _round_up(B, 128))
    b_pad = _round_up(B, tb)

    # Transposed, batch-padded input: (3, B_pad). Only ~12 B/row of HBM traffic.
    x_t = jnp.zeros((IN_DIM, b_pad), jnp.float32)
    x_t = x_t.at[:, :B].set(x.astype(jnp.float32).T)

    out = pl.pallas_call(
        _mlp_kernel,
        out_shape=jax.ShapeDtypeStruct((1, b_pad), jnp.float32),
        grid_spec=pltpu.PrefetchScalarGridSpec(
            num_scalar_prefetch=0,
            grid=(b_pad // tb,),
            in_specs=[
                pl.BlockSpec((IN_DIM, tb), lambda i: (0, i)),      # x tile
                pl.BlockSpec((4, PAD, PAD), lambda i: (0, 0, 0)),  # fused weights (resident)
                pl.BlockSpec((PAD, 4), lambda i: (0, 0)),          # fused biases (resident)
            ],
            out_specs=pl.BlockSpec((1, tb), lambda i: (0, i)),     # lane-dense output row
        ),
        compiler_params=pltpu.CompilerParams(
            dimension_semantics=("parallel",)),
    )(x_t, w_stack, b_stack)

    return out[0, :B].reshape(B, OUT_DIM)


def init_params(key):
    """Deterministic Xavier-uniform weights, zero biases (mirrors _init_weights).
    Weights are in PyTorch (out_features, in_features) layout."""
    def xavier(k, fan_out, fan_in):
        limit = (6.0 / (fan_in + fan_out)) ** 0.5
        return jax.random.uniform(k, (fan_out, fan_in), jnp.float32, -limit, limit)

    k1, k2, k3, k4 = jax.random.split(key, 4)
    return (
        (xavier(k1, HID, IN_DIM),  jnp.zeros((HID,), jnp.float32)),
        (xavier(k2, HID, HID),     jnp.zeros((HID,), jnp.float32)),
        (xavier(k3, HID, HID),     jnp.zeros((HID,), jnp.float32)),
        (xavier(k4, OUT_DIM, HID), jnp.zeros((OUT_DIM,), jnp.float32)),
    )


def ref_forward(x, params):
    (w1, b1), (w2, b2), (w3, b3), (w4, b4) = params
    h = jnp.maximum(x @ w1.T + b1, 0.0)
    h = jnp.maximum(h @ w2.T + b2, 0.0)
    h = jnp.maximum(h @ w3.T + b3, 0.0)
    return h @ w4.T + b4


if __name__ == "__main__":
    key = jax.random.PRNGKey(0)
    pkey, xkey1, xkey2 = jax.random.split(key, 3)

    params = init_params(pkey)
    packed = pack_params(params)          # packed ONCE, outside the forward

    ok = True

    # Small primary test (single tile, batch < tile).
    B = 8
    x = jax.random.normal(xkey1, (B, IN_DIM), jnp.float32)
    out = jax.block_until_ready(simple_net_forward(x, packed))
    ref = ref_forward(x, params)
    ok &= out.shape == (B, OUT_DIM)
    ok &= bool(jnp.allclose(out, ref, atol=1e-4, rtol=1e-4))

    # Multi-tile test with a ragged tail (exercises grid > 1 and batch padding).
    B2 = 1037
    x2 = jax.random.normal(xkey2, (B2, IN_DIM), jnp.float32)
    out2 = jax.block_until_ready(simple_net_forward(x2, packed))
    ref2 = ref_forward(x2, params)
    ok &= out2.shape == (B2, OUT_DIM)
    ok &= bool(jnp.allclose(out2, ref2, atol=1e-4, rtol=1e-4))

    if ok:
        print("KERNEL_OK")
    else:
        raise SystemExit("mismatch vs reference")
</pallas_src>

<mosaic_0001>
module attributes {stable_mosaic.version = 11 : i64} {
  func.func @_mlp_kernel(%arg0: i32, %arg1: memref<3x128xf32, #tpu.memory_space<vmem>>, %arg2: memref<4x128x128xf32, #tpu.memory_space<vmem>>, %arg3: memref<128x4xf32, #tpu.memory_space<vmem>>, %arg4: memref<1x128xf32, #tpu.memory_space<vmem>>) attributes {dimension_semantics = [#tpu.dimension_semantics<parallel>], iteration_bounds = array<i64: 1>, scalar_prefetch = 0 : i64, scratch_operands = 0 : i64, tpu.core_type = #tpu.core_type<tc>, window_params = [{transform_indices = @transform_0, window_bounds = array<i64: 3, 128>}, {pipeline_mode = #tpu.pipeline_mode<synchronous>, transform_indices = @transform_1, window_bounds = array<i64: 4, 128, 128>}, {pipeline_mode = #tpu.pipeline_mode<synchronous>, transform_indices = @transform_2, window_bounds = array<i64: 128, 4>}, {transform_indices = @transform_3, window_bounds = array<i64: 1, 128>}]} {
    %c0 = arith.constant 0 : index
    %c0_0 = arith.constant 0 : index
    %0 = vector.load %arg1[%c0, %c0_0] : memref<3x128xf32, #tpu.memory_space<vmem>>, vector<3x128xf32>
    %c0_1 = arith.constant 0 : index
    %c0_2 = arith.constant 0 : index
    %1 = vector.load %arg3[%c0_1, %c0_2] : memref<128x4xf32, #tpu.memory_space<vmem>>, vector<128x4xf32>
    %c0_3 = arith.constant 0 : index
    %c0_4 = arith.constant 0 : index
    %c0_5 = arith.constant 0 : index
    %2 = vector.load %arg2[%c0_3, %c0_4, %c0_5] : memref<4x128x128xf32, #tpu.memory_space<vmem>>, vector<1x128x128xf32>
    %3 = vector.shape_cast %2 : vector<1x128x128xf32> to vector<128x128xf32>
    %4 = vector.extract_strided_slice %1 {offsets = [0, 0], sizes = [128, 1], strides = [1, 1]} : vector<128x4xf32> to vector<128x1xf32>
    %5 = vector.extract_strided_slice %3 {offsets = [0, 0], sizes = [128, 1], strides = [1, 1]} : vector<128x128xf32> to vector<128x1xf32>
    %6 = vector.extract_strided_slice %0 {offsets = [0, 0], sizes = [1, 128], strides = [1, 1]} : vector<3x128xf32> to vector<1x128xf32>
    %7 = vector.broadcast %5 : vector<128x1xf32> to vector<128x128xf32>
    %8 = vector.broadcast %6 : vector<1x128xf32> to vector<128x128xf32>
    %9 = arith.mulf %7, %8 : vector<128x128xf32>
    %10 = vector.broadcast %4 : vector<128x1xf32> to vector<128x128xf32>
    %11 = arith.addf %10, %9 : vector<128x128xf32>
    %12 = vector.extract_strided_slice %3 {offsets = [0, 1], sizes = [128, 1], strides = [1, 1]} : vector<128x128xf32> to vector<128x1xf32>
    %13 = vector.extract_strided_slice %0 {offsets = [1, 0], sizes = [1, 128], strides = [1, 1]} : vector<3x128xf32> to vector<1x128xf32>
    %14 = vector.broadcast %12 : vector<128x1xf32> to vector<128x128xf32>
    %15 = vector.broadcast %13 : vector<1x128xf32> to vector<128x128xf32>
    %16 = arith.mulf %14, %15 : vector<128x128xf32>
    %17 = arith.addf %11, %16 : vector<128x128xf32>
    %18 = vector.extract_strided_slice %3 {offsets = [0, 2], sizes = [128, 1], strides = [1, 1]} : vector<128x128xf32> to vector<128x1xf32>
    %19 = vector.extract_strided_slice %0 {offsets = [2, 0], sizes = [1, 128], strides = [1, 1]} : vector<3x128xf32> to vector<1x128xf32>
    %20 = vector.broadcast %18 : vector<128x1xf32> to vector<128x128xf32>
    %21 = vector.broadcast %19 : vector<1x128xf32> to vector<128x128xf32>
    %22 = arith.mulf %20, %21 : vector<128x128xf32>
    %23 = arith.addf %17, %22 : vector<128x128xf32>
    %cst = arith.constant 0.000000e+00 : f32
    %24 = vector.broadcast %cst : f32 to vector<128x128xf32>
    %25 = arith.maximumf %23, %24 : vector<128x128xf32>
    %c1 = arith.constant 1 : index
    %c0_6 = arith.constant 0 : index
    %c0_7 = arith.constant 0 : index
    %26 = vector.load %arg2[%c1, %c0_6, %c0_7] : memref<4x128x128xf32, #tpu.memory_space<vmem>>, vector<1x128x128xf32>
    %27 = vector.shape_cast %26 : vector<1x128x128xf32> to vector<128x128xf32>
    %cst_8 = arith.constant dense<0.000000e+00> : vector<128x128xf32>
    %28 = tpu.matmul %27, %25, %cst_8 {dimension_numbers = #tpu.dot_dimension_numbers<[1], [0], [0], [1], [0, 0, 1, 1], [], []>} : vector<128x128xf32>, vector<128x128xf32>, vector<128x128xf32> -> vector<128x128xf32>
    %29 = vector.extract_strided_slice %1 {offsets = [0, 1], sizes = [128, 1], strides = [1, 1]} : vector<128x4xf32> to vector<128x1xf32>
    %30 = vector.broadcast %29 : vector<128x1xf32> to vector<128x128xf32>
    %31 = arith.addf %28, %30 : vector<128x128xf32>
    %cst_9 = arith.constant 0.000000e+00 : f32
    %32 = vector.broadcast %cst_9 : f32 to vector<128x128xf32>
    %33 = arith.maximumf %31, %32 : vector<128x128xf32>
    %c2 = arith.constant 2 : index
    %c0_10 = arith.constant 0 : index
    %c0_11 = arith.constant 0 : index
    %34 = vector.load %arg2[%c2, %c0_10, %c0_11] : memref<4x128x128xf32, #tpu.memory_space<vmem>>, vector<1x128x128xf32>
    %35 = vector.shape_cast %34 : vector<1x128x128xf32> to vector<128x128xf32>
    %cst_12 = arith.constant dense<0.000000e+00> : vector<128x128xf32>
    %36 = tpu.matmul %35, %33, %cst_12 {dimension_numbers = #tpu.dot_dimension_numbers<[1], [0], [0], [1], [0, 0, 1, 1], [], []>} : vector<128x128xf32>, vector<128x128xf32>, vector<128x128xf32> -> vector<128x128xf32>
    %37 = vector.extract_strided_slice %1 {offsets = [0, 2], sizes = [128, 1], strides = [1, 1]} : vector<128x4xf32> to vector<128x1xf32>
    %38 = vector.broadcast %37 : vector<128x1xf32> to vector<128x128xf32>
    %39 = arith.addf %36, %38 : vector<128x128xf32>
    %cst_13 = arith.constant 0.000000e+00 : f32
    %40 = vector.broadcast %cst_13 : f32 to vector<128x128xf32>
    %41 = arith.maximumf %39, %40 : vector<128x128xf32>
    %c3 = arith.constant 3 : index
    %c0_14 = arith.constant 0 : index
    %c0_15 = arith.constant 0 : index
    %42 = vector.load %arg2[%c3, %c0_14, %c0_15] : memref<4x128x128xf32, #tpu.memory_space<vmem>>, vector<1x128x128xf32>
    %43 = vector.shape_cast %42 : vector<1x128x128xf32> to vector<128x128xf32>
    %cst_16 = arith.constant dense<0.000000e+00> : vector<128x128xf32>
    %44 = tpu.matmul %43, %41, %cst_16 {dimension_numbers = #tpu.dot_dimension_numbers<[1], [0], [0], [1], [0, 0, 1, 1], [], []>} : vector<128x128xf32>, vector<128x128xf32>, vector<128x128xf32> -> vector<128x128xf32>
    %45 = vector.extract_strided_slice %44 {offsets = [0, 0], sizes = [1, 128], strides = [1, 1]} : vector<128x128xf32> to vector<1x128xf32>
    %46 = vector.extract_strided_slice %1 {offsets = [0, 3], sizes = [1, 1], strides = [1, 1]} : vector<128x4xf32> to vector<1x1xf32>
    %47 = vector.broadcast %46 : vector<1x1xf32> to vector<1x128xf32>
    %48 = arith.addf %45, %47 : vector<1x128xf32>
    %c0_17 = arith.constant 0 : index
    %c0_18 = arith.constant 0 : index
    %49 = vector.load %arg4[%c0_17, %c0_18] : memref<1x128xf32, #tpu.memory_space<vmem>>, vector<1x128xf32>
    tpu.vector_store %arg4[%c0_17, %c0_18], %48 {strides = array<i32>} : memref<1x128xf32, #tpu.memory_space<vmem>>, vector<1x128xf32>,
    return
  }
  func.func @transform_0(%arg0: i32) -> (i32, i32) {
    %c0_i32 = arith.constant 0 : i32
    %c0_i32_0 = arith.constant 0 : i32
    return %c0_i32, %arg0 : i32, i32
  }
  func.func @transform_1(%arg0: i32) -> (i32, i32, i32) {
    %c0_i32 = arith.constant 0 : i32
    %c0_i32_0 = arith.constant 0 : i32
    %c0_i32_1 = arith.constant 0 : i32
    %c0_i32_2 = arith.constant 0 : i32
    return %c0_i32, %c0_i32_0, %c0_i32_1 : i32, i32, i32
  }
  func.func @transform_2(%arg0: i32) -> (i32, i32) {
    %c0_i32 = arith.constant 0 : i32
    %c0_i32_0 = arith.constant 0 : i32
    %c0_i32_1 = arith.constant 0 : i32
    return %c0_i32, %c0_i32_0 : i32, i32
  }
  func.func @transform_3(%arg0: i32) -> (i32, i32) {
    %c0_i32 = arith.constant 0 : i32
    %c0_i32_0 = arith.constant 0 : i32
    return %c0_i32, %arg0 : i32, i32
  }
}

</mosaic_0001>

<llo_original>
// kernel: simple_net_forward.1
$region0: #{simple_net_forward.1}
  #allocation0 [shape = 'u32[]', space=smem, size = 0x4, offset = 0x4, fixed_abs, tag = 'smem constant byte address 0x4 - core index']
  #allocation1 [shape = 'u32[144,128]{1,0:T(1,128)}', space=vmem, size = 0x12000, scoped, tag = 'internal scratch']
  %s0 = inlined_call_operand.vmem [shape: f32[3,128], index: 0, kind: input, shape index: {}]
  %s1 = inlined_call_operand.hbm [shape: f32[4,128,128], index: 1, kind: input, shape index: {}]
  %s2 = inlined_call_operand.vmem [shape: f32[128,4], index: 2, kind: input, shape index: {}]
  %s3 = inlined_call_operand.vmem [shape: f32[1,128], index: 3, kind: output, shape index: {}]
  %s4 = sld [smem:[#allocation0]]
  $region26: #{simple_net_forward.1} parent=0
    _
  %s6 = ssub.s32 1, %s4
  %s7 = scalar_select 0, %s6, %s4
  $region1: #{simple_net_forward.1} parent=0
    #allocation2 [shape = 'u8[262144]{0}', space=vmem, size = 0x40000, scoped, tag = 'input window, operand 1, single buffered']
    #allocation3 [shape = 's32[1]{0}', space=sflag, size = 0x4, scoped, tag = 'scoped memory for simple_net_forward.1']
    %8 = vsyncpa [#allocation3], 0
    // Predicated region
    $region2: #{simple_net_forward.1} parent=1 // pred_check
      _
    $region3: #{simple_net_forward.1} parent=1 // pred_check_branch
      %10 = sbr.rel (0) target = $region5
    $region4: #{simple_net_forward.1} parent=1 // pred_region
      _
    $region5: #{simple_net_forward.1} parent=1 // pred_fallthru
      _
    // Predicated region
    $region6: #{simple_net_forward.1} parent=1 // pred_check
      _
    $region7: #{simple_net_forward.1} parent=1 // pred_check_branch
      %12 = sbr.rel (0) target = $region9
    $region8: #{simple_net_forward.1} parent=1 // pred_region
      %s14 = ssub.s32 8192, 8192
      %15 = vsyncadd [#allocation3], %s14
      %s16 = sshll.u32 [#allocation2], 4
      %s17 = int_to_ptr.vmem [resolvable:$true] %s16
      %22 = dma.hbm_to_vmem [thread:$0]  %s1, 8192, %s17, [#allocation3], 128, 128, 8
    $region9: #{simple_net_forward.1} parent=1 // pred_fallthru
      _
    // Predicated region
    $region10: #{simple_net_forward.1} parent=1 // pred_check
      _
    $region11: #{simple_net_forward.1} parent=1 // pred_check_branch
      %24 = sbr.rel (0) target = $region13
    $region12: #{simple_net_forward.1} parent=1 // pred_region
      _
    $region13: #{simple_net_forward.1} parent=1 // pred_fallthru
      _
    // Predicated region
    $region14: #{simple_net_forward.1} parent=1 // pred_check
      _
    $region15: #{simple_net_forward.1} parent=1 // pred_check_branch
      %26 = sbr.rel (0) target = $region17
    $region16: #{simple_net_forward.1} parent=1 // pred_region
      %27 = dma.done [#allocation3], 8192
    $region17: #{simple_net_forward.1} parent=1 // pred_fallthru
      _
    %v28 = vld [vmem:[%s0] sm:$0x7]
    %v29 = vld [vmem:[%s2] sm:$0xff]
    %v30 = vld [vmem:[%s2 + $0x8] sm:$0xff]
    %v31 = vld [vmem:[%s2 + $0x10] sm:$0xff]
    %v32 = vld [vmem:[%s2 + $0x18] sm:$0xff]
    %v33 = vld [vmem:[%s2 + $0x20] sm:$0xff]
    %v34 = vld [vmem:[%s2 + $0x28] sm:$0xff]
    %v35 = vld [vmem:[%s2 + $0x30] sm:$0xff]
    %v36 = vld [vmem:[%s2 + $0x38] sm:$0xff]
    %v37 = vld [vmem:[%s2 + $0x40] sm:$0xff]
    %v38 = vld [vmem:[%s2 + $0x48] sm:$0xff]
    %v39 = vld [vmem:[%s2 + $0x50] sm:$0xff]
    %v40 = vld [vmem:[%s2 + $0x58] sm:$0xff]
    %v41 = vld [vmem:[%s2 + $0x60] sm:$0xff]
    %v42 = vld [vmem:[%s2 + $0x68] sm:$0xff]
    %v43 = vld [vmem:[%s2 + $0x70] sm:$0xff]
    %v44 = vld [vmem:[%s2 + $0x78] sm:$0xff]
    %v45 = vld [vmem:[#allocation2] sm:$0xff]
    %v46 = vld [vmem:[#allocation2 + $0x8] sm:$0xff]
    %v47 = vld [vmem:[#allocation2 + $0x10] sm:$0xff]
    %v48 = vld [vmem:[#allocation2 + $0x18] sm:$0xff]
    %v49 = vld [vmem:[#allocation2 + $0x20] sm:$0xff]
    %v50 = vld [vmem:[#allocation2 + $0x28] sm:$0xff]
    %v51 = vld [vmem:[#allocation2 + $0x30] sm:$0xff]
    %v52 = vld [vmem:[#allocation2 + $0x38] sm:$0xff]
    %v53 = vld [vmem:[#allocation2 + $0x40] sm:$0xff]
    %v54 = vld [vmem:[#allocation2 + $0x48] sm:$0xff]
    %v55 = vld [vmem:[#allocation2 + $0x50] sm:$0xff]
    %v56 = vld [vmem:[#allocation2 + $0x58] sm:$0xff]
    %v57 = vld [vmem:[#allocation2 + $0x60] sm:$0xff]
    %v58 = vld [vmem:[#allocation2 + $0x68] sm:$0xff]
    %v59 = vld [vmem:[#allocation2 + $0x70] sm:$0xff]
    %v60 = vld [vmem:[#allocation2 + $0x78] sm:$0xff]
    %62 = vset.pattern.permute.xlu0 0
    %63 = vperm.xlu0 %62, %v45
    %v64 = vpop.permute.xlu0 %63
    %67 = vset.pattern.permute.xlu0 0
    %68 = vperm.xlu0 %67, %v46
    %v69 = vpop.permute.xlu0 %68
    %72 = vset.pattern.permute.xlu0 0
    %73 = vperm.xlu0 %72, %v47
    %v74 = vpop.permute.xlu0 %73
    %77 = vset.pattern.permute.xlu0 0
    %78 = vperm.xlu0 %77, %v48
    %v79 = vpop.permute.xlu0 %78
    %82 = vset.pattern.permute.xlu0 0
    %83 = vperm.xlu0 %82, %v49
    %v84 = vpop.permute.xlu0 %83
    %87 = vset.pattern.permute.xlu0 0
    %88 = vperm.xlu0 %87, %v50
    %v89 = vpop.permute.xlu0 %88
    %92 = vset.pattern.permute.xlu0 0
    %93 = vperm.xlu0 %92, %v51
    %v94 = vpop.permute.xlu0 %93
    %97 = vset.pattern.permute.xlu0 0
    %98 = vperm.xlu0 %97, %v52
    %v99 = vpop.permute.xlu0 %98
    %102 = vset.pattern.permute.xlu0 0
    %103 = vperm.xlu0 %102, %v53
    %v104 = vpop.permute.xlu0 %103
    %107 = vset.pattern.permute.xlu0 0
    %108 = vperm.xlu0 %107, %v54
    %v109 = vpop.permute.xlu0 %108
    %112 = vset.pattern.permute.xlu0 0
    %113 = vperm.xlu0 %112, %v55
    %v114 = vpop.permute.xlu0 %113
    %117 = vset.pattern.permute.xlu0 0
    %118 = vperm.xlu0 %117, %v56
    %v119 = vpop.permute.xlu0 %118
    %122 = vset.pattern.permute.xlu0 0
    %123 = vperm.xlu0 %122, %v57
    %v124 = vpop.permute.xlu0 %123
    %127 = vset.pattern.permute.xlu0 0
    %128 = vperm.xlu0 %127, %v58
    %v129 = vpop.permute.xlu0 %128
    %132 = vset.pattern.permute.xlu0 0
    %133 = vperm.xlu0 %132, %v59
    %v134 = vpop.permute.xlu0 %133
    %137 = vset.pattern.permute.xlu0 0
    %138 = vperm.xlu0 %137, %v60
    %v139 = vpop.permute.xlu0 %138
    %v141 = vlaneseq
    %v142 = vshrl.u32 %v141, 7
    %v143 = vsub.s32 0, %v142
    %v144 = vrot.slane %v28, %v143
    %v145 = vmul.f32 %v64, %v144
    %v146 = vmul.f32 %v69, %v144
    %v147 = vmul.f32 %v74, %v144
    %v148 = vmul.f32 %v79, %v144
    %v149 = vmul.f32 %v84, %v144
    %v150 = vmul.f32 %v89, %v144
    %v151 = vmul.f32 %v94, %v144
    %v152 = vmul.f32 %v99, %v144
    %v153 = vmul.f32 %v104, %v144
    %v154 = vmul.f32 %v109, %v144
    %v155 = vmul.f32 %v114, %v144
    %v156 = vmul.f32 %v119, %v144
    %v157 = vmul.f32 %v124, %v144
    %v158 = vmul.f32 %v129, %v144
    %v159 = vmul.f32 %v134, %v144
    %v160 = vmul.f32 %v139, %v144
    %162 = vset.pattern.permute.xlu0 0
    %163 = vperm.xlu0 %162, %v29
    %v164 = vpop.permute.xlu0 %163
    %167 = vset.pattern.permute.xlu0 0
    %168 = vperm.xlu0 %167, %v30
    %v169 = vpop.permute.xlu0 %168
    %172 = vset.pattern.permute.xlu0 0
    %173 = vperm.xlu0 %172, %v31
    %v174 = vpop.permute.xlu0 %173
    %177 = vset.pattern.permute.xlu0 0
    %178 = vperm.xlu0 %177, %v32
    %v179 = vpop.permute.xlu0 %178
    %182 = vset.pattern.permute.xlu0 0
    %183 = vperm.xlu0 %182, %v33
    %v184 = vpop.permute.xlu0 %183
    %187 = vset.pattern.permute.xlu0 0
    %188 = vperm.xlu0 %187, %v34
    %v189 = vpop.permute.xlu0 %188
    %192 = vset.pattern.permute.xlu0 0
    %193 = vperm.xlu0 %192, %v35
    %v194 = vpop.permute.xlu0 %193
    %197 = vset.pattern.permute.xlu0 0
    %198 = vperm.xlu0 %197, %v36
    %v199 = vpop.permute.xlu0 %198
    %202 = vset.pattern.permute.xlu0 0
    %203 = vperm.xlu0 %202, %v37
    %v204 = vpop.permute.xlu0 %203
    %207 = vset.pattern.permute.xlu0 0
    %208 = vperm.xlu0 %207, %v38
    %v209 = vpop.permute.xlu0 %208
    %212 = vset.pattern.permute.xlu0 0
    %213 = vperm.xlu0 %212, %v39
    %v214 = vpop.permute.xlu0 %213
    %217 = vset.pattern.permute.xlu0 0
    %218 = vperm.xlu0 %217, %v40
    %v219 = vpop.permute.xlu0 %218
    %222 = vset.pattern.permute.xlu0 0
    %223 = vperm.xlu0 %222, %v41
    %v224 = vpop.permute.xlu0 %223
    %227 = vset.pattern.permute.xlu0 0
    %228 = vperm.xlu0 %227, %v42
    %v229 = vpop.permute.xlu0 %228
    %232 = vset.pattern.permute.xlu0 0
    %233 = vperm.xlu0 %232, %v43
    %v234 = vpop.permute.xlu0 %233
    %237 = vset.pattern.permute.xlu0 0
    %238 = vperm.xlu0 %237, %v44
    %v239 = vpop.permute.xlu0 %238
    %v241 = vadd.f32 %v164, %v145
    %v242 = vadd.f32 %v169, %v146
    %v243 = vadd.f32 %v174, %v147
    %v244 = vadd.f32 %v179, %v148
    %v245 = vadd.f32 %v184, %v149
    %v246 = vadd.f32 %v189, %v150
    %v247 = vadd.f32 %v194, %v151
    %v248 = vadd.f32 %v199, %v152
    %v249 = vadd.f32 %v204, %v153
    %v250 = vadd.f32 %v209, %v154
    %v251 = vadd.f32 %v214, %v155
    %v252 = vadd.f32 %v219, %v156
    %v253 = vadd.f32 %v224, %v157
    %v254 = vadd.f32 %v229, %v158
    %v255 = vadd.f32 %v234, %v159
    %v256 = vadd.f32 %v239, %v160
    %257 = vset.pattern.permute.xlu0 1
    %258 = vperm.xlu0 %257, %v45
    %v259 = vpop.permute.xlu0 %258
    %261 = vset.pattern.permute.xlu0 1
    %262 = vperm.xlu0 %261, %v46
    %v263 = vpop.permute.xlu0 %262
    %265 = vset.pattern.permute.xlu0 1
    %266 = vperm.xlu0 %265, %v47
    %v267 = vpop.permute.xlu0 %266
    %269 = vset.pattern.permute.xlu0 1
    %270 = vperm.xlu0 %269, %v48
    %v271 = vpop.permute.xlu0 %270
    %273 = vset.pattern.permute.xlu0 1
    %274 = vperm.xlu0 %273, %v49
    %v275 = vpop.permute.xlu0 %274
    %277 = vset.pattern.permute.xlu0 1
    %278 = vperm.xlu0 %277, %v50
    %v279 = vpop.permute.xlu0 %278
    %281 = vset.pattern.permute.xlu0 1
    %282 = vperm.xlu0 %281, %v51
    %v283 = vpop.permute.xlu0 %282
    %285 = vset.pattern.permute.xlu0 1
    %286 = vperm.xlu0 %285, %v52
    %v287 = vpop.permute.xlu0 %286
    %289 = vset.pattern.permute.xlu0 1
    %290 = vperm.xlu0 %289, %v53
    %v291 = vpop.permute.xlu0 %290
    %293 = vset.pattern.permute.xlu0 1
    %294 = vperm.xlu0 %293, %v54
    %v295 = vpop.permute.xlu0 %294
    %297 = vset.pattern.permute.xlu0 1
    %298 = vperm.xlu0 %297, %v55
    %v299 = vpop.permute.xlu0 %298
    %301 = vset.pattern.permute.xlu0 1
    %302 = vperm.xlu0 %301, %v56
    %v303 = vpop.permute.xlu0 %302
    %305 = vset.pattern.permute.xlu0 1
    %306 = vperm.xlu0 %305, %v57
    %v307 = vpop.permute.xlu0 %306
    %309 = vset.pattern.permute.xlu0 1
    %310 = vperm.xlu0 %309, %v58
    %v311 = vpop.permute.xlu0 %310
    %313 = vset.pattern.permute.xlu0 1
    %314 = vperm.xlu0 %313, %v59
    %v315 = vpop.permute.xlu0 %314
    %317 = vset.pattern.permute.xlu0 1
    %318 = vperm.xlu0 %317, %v60
    %v319 = vpop.permute.xlu0 %318
    %v321 = vlaneseq
    %v322 = vshrl.u32 %v321, 7
    %v323 = vsub.s32 1, %v322
    %v324 = vrot.slane %v28, %v323
    %v325 = vmul.f32 %v259, %v324
    %v326 = vmul.f32 %v263, %v324
    %v327 = vmul.f32 %v267, %v324
    %v328 = vmul.f32 %v271, %v324
    %v329 = vmul.f32 %v275, %v324
    %v330 = vmul.f32 %v279, %v324
    %v331 = vmul.f32 %v283, %v324
    %v332 = vmul.f32 %v287, %v324
    %v333 = vmul.f32 %v291, %v324
    %v334 = vmul.f32 %v295, %v324
    %v335 = vmul.f32 %v299, %v324
    %v336 = vmul.f32 %v303, %v324
    %v337 = vmul.f32 %v307, %v324
    %v338 = vmul.f32 %v311, %v324
    %v339 = vmul.f32 %v315, %v324
    %v340 = vmul.f32 %v319, %v324
    %v341 = vadd.f32 %v241, %v325
    %v342 = vadd.f32 %v242, %v326
    %v343 = vadd.f32 %v243, %v327
    %v344 = vadd.f32 %v244, %v328
    %v345 = vadd.f32 %v245, %v329
    %v346 = vadd.f32 %v246, %v330
    %v347 = vadd.f32 %v247, %v331
    %v348 = vadd.f32 %v248, %v332
    %v349 = vadd.f32 %v249, %v333
    %v350 = vadd.f32 %v250, %v334
    %v351 = vadd.f32 %v251, %v335
    %v352 = vadd.f32 %v252, %v336
    %v353 = vadd.f32 %v253, %v337
    %v354 = vadd.f32 %v254, %v338
    %v355 = vadd.f32 %v255, %v339
    %v356 = vadd.f32 %v256, %v340
    %357 = vset.pattern.permute.xlu0 2
    %358 = vperm.xlu0 %357, %v45
    %v359 = vpop.permute.xlu0 %358
    %361 = vset.pattern.permute.xlu0 2
    %362 = vperm.xlu0 %361, %v46
    %v363 = vpop.permute.xlu0 %362
    %365 = vset.pattern.permute.xlu0 2
    %366 = vperm.xlu0 %365, %v47
    %v367 = vpop.permute.xlu0 %366
    %369 = vset.pattern.permute.xlu0 2
    %370 = vperm.xlu0 %369, %v48
    %v371 = vpop.permute.xlu0 %370
    %373 = vset.pattern.permute.xlu0 2
    %374 = vperm.xlu0 %373, %v49
    %v375 = vpop.permute.xlu0 %374
    %377 = vset.pattern.permute.xlu0 2
    %378 = vperm.xlu0 %377, %v50
    %v379 = vpop.permute.xlu0 %378
    %381 = vset.pattern.permute.xlu0 2
    %382 = vperm.xlu0 %381, %v51
    %v383 = vpop.permute.xlu0 %382
    %385 = vset.pattern.permute.xlu0 2
    %386 = vperm.xlu0 %385, %v52
    %v387 = vpop.permute.xlu0 %386
    %389 = vset.pattern.permute.xlu0 2
    %390 = vperm.xlu0 %389, %v53
    %v391 = vpop.permute.xlu0 %390
    %393 = vset.pattern.permute.xlu0 2
    %394 = vperm.xlu0 %393, %v54
    %v395 = vpop.permute.xlu0 %394
    %397 = vset.pattern.permute.xlu0 2
    %398 = vperm.xlu0 %397, %v55
    %v399 = vpop.permute.xlu0 %398
    %401 = vset.pattern.permute.xlu0 2
    %402 = vperm.xlu0 %401, %v56
    %v403 = vpop.permute.xlu0 %402
    %405 = vset.pattern.permute.xlu0 2
    %406 = vperm.xlu0 %405, %v57
    %v407 = vpop.permute.xlu0 %406
    %409 = vset.pattern.permute.xlu0 2
    %410 = vperm.xlu0 %409, %v58
    %v411 = vpop.permute.xlu0 %410
    %413 = vset.pattern.permute.xlu0 2
    %414 = vperm.xlu0 %413, %v59
    %v415 = vpop.permute.xlu0 %414
    %417 = vset.pattern.permute.xlu0 2
    %418 = vperm.xlu0 %417, %v60
    %v419 = vpop.permute.xlu0 %418
    %v421 = vlaneseq
    %v422 = vshrl.u32 %v421, 7
    %v423 = vsub.s32 2, %v422
    %v424 = vrot.slane %v28, %v423
    %v425 = vmul.f32 %v359, %v424
    %v426 = vmul.f32 %v363, %v424
    %v427 = vmul.f32 %v367, %v424
    %v428 = vmul.f32 %v371, %v424
    %v429 = vmul.f32 %v375, %v424
    %v430 = vmul.f32 %v379, %v424
    %v431 = vmul.f32 %v383, %v424
    %v432 = vmul.f32 %v387, %v424
    %v433 = vmul.f32 %v391, %v424
    %v434 = vmul.f32 %v395, %v424
    %v435 = vmul.f32 %v399, %v424
    %v436 = vmul.f32 %v403, %v424
    %v437 = vmul.f32 %v407, %v424
    %v438 = vmul.f32 %v411, %v424
    %v439 = vmul.f32 %v415, %v424
    %v440 = vmul.f32 %v419, %v424
    %v441 = vadd.f32 %v341, %v425
    %v442 = vadd.f32 %v342, %v426
    %v443 = vadd.f32 %v343, %v427
    %v444 = vadd.f32 %v344, %v428
    %v445 = vadd.f32 %v345, %v429
    %v446 = vadd.f32 %v346, %v430
    %v447 = vadd.f32 %v347, %v431
    %v448 = vadd.f32 %v348, %v432
    %v449 = vadd.f32 %v349, %v433
    %v450 = vadd.f32 %v350, %v434
    %v451 = vadd.f32 %v351, %v435
    %v452 = vadd.f32 %v352, %v436
    %v453 = vadd.f32 %v353, %v437
    %v454 = vadd.f32 %v354, %v438
    %v455 = vadd.f32 %v355, %v439
    %v456 = vadd.f32 %v356, %v440
    %v457 = vmax.f32 %v441, 0.0
    %v458 = vmax.f32 %v442, 0.0
    %v459 = vmax.f32 %v443, 0.0
    %v460 = vmax.f32 %v444, 0.0
    %v461 = vmax.f32 %v445, 0.0
    %v462 = vmax.f32 %v446, 0.0
    %v463 = vmax.f32 %v447, 0.0
    %v464 = vmax.f32 %v448, 0.0
    %v465 = vmax.f32 %v449, 0.0
    %v466 = vmax.f32 %v450, 0.0
    %v467 = vmax.f32 %v451, 0.0
    %v468 = vmax.f32 %v452, 0.0
    %v469 = vmax.f32 %v453, 0.0
    %v470 = vmax.f32 %v454, 0.0
    %v471 = vmax.f32 %v455, 0.0
    %v472 = vmax.f32 %v456, 0.0
    %s473 = scalar_lea.vmem [#allocation2], 128
    %v474 = vld [vmem:[%s473] sm:$0xff]
    %v475 = vld [vmem:[%s473 + $0x8] sm:$0xff]
    %v476 = vld [vmem:[%s473 + $0x10] sm:$0xff]
    %v477 = vld [vmem:[%s473 + $0x18] sm:$0xff]
    %v478 = vld [vmem:[%s473 + $0x20] sm:$0xff]
    %v479 = vld [vmem:[%s473 + $0x28] sm:$0xff]
    %v480 = vld [vmem:[%s473 + $0x30] sm:$0xff]
    %v481 = vld [vmem:[%s473 + $0x38] sm:$0xff]
    %v482 = vld [vmem:[%s473 + $0x40] sm:$0xff]
    %v483 = vld [vmem:[%s473 + $0x48] sm:$0xff]
    %v484 = vld [vmem:[%s473 + $0x50] sm:$0xff]
    %v485 = vld [vmem:[%s473 + $0x58] sm:$0xff]
    %v486 = vld [vmem:[%s473 + $0x60] sm:$0xff]
    %v487 = vld [vmem:[%s473 + $0x68] sm:$0xff]
    %v488 = vld [vmem:[%s473 + $0x70] sm:$0xff]
    %v489 = vld [vmem:[%s473 + $0x78] sm:$0xff]
    %490 = vset.pattern.permute.xlu0 1
    %491 = vperm.xlu0 %490, %v29
    %v492 = vpop.permute.xlu0 %491
    %494 = vset.pattern.permute.xlu0 1
    %495 = vperm.xlu0 %494, %v30
    %v496 = vpop.permute.xlu0 %495
    %498 = vset.pattern.permute.xlu0 1
    %499 = vperm.xlu0 %498, %v31
    %v500 = vpop.permute.xlu0 %499
    %502 = vset.pattern.permute.xlu0 1
    %503 = vperm.xlu0 %502, %v32
    %v504 = vpop.permute.xlu0 %503
    %506 = vset.pattern.permute.xlu0 1
    %507 = vperm.xlu0 %506, %v33
    %v508 = vpop.permute.xlu0 %507
    %510 = vset.pattern.permute.xlu0 1
    %511 = vperm.xlu0 %510, %v34
    %v512 = vpop.permute.xlu0 %511
    %514 = vset.pattern.permute.xlu0 1
    %515 = vperm.xlu0 %514, %v35
    %v516 = vpop.permute.xlu0 %515
    %518 = vset.pattern.permute.xlu0 1
    %519 = vperm.xlu0 %518, %v36
    %v520 = vpop.permute.xlu0 %519
    %522 = vset.pattern.permute.xlu0 1
    %523 = vperm.xlu0 %522, %v37
    %v524 = vpop.permute.xlu0 %523
    %526 = vset.pattern.permute.xlu0 1
    %527 = vperm.xlu0 %526, %v38
    %v528 = vpop.permute.xlu0 %527
    %530 = vset.pattern.permute.xlu0 1
    %531 = vperm.xlu0 %530, %v39
    %v532 = vpop.permute.xlu0 %531
    %534 = vset.pattern.permute.xlu0 1
    %535 = vperm.xlu0 %534, %v40
    %v536 = vpop.permute.xlu0 %535
    %538 = vset.pattern.permute.xlu0 1
    %539 = vperm.xlu0 %538, %v41
    %v540 = vpop.permute.xlu0 %539
    %542 = vset.pattern.permute.xlu0 1
    %543 = vperm.xlu0 %542, %v42
    %v544 = vpop.permute.xlu0 %543
    %546 = vset.pattern.permute.xlu0 1
    %547 = vperm.xlu0 %546, %v43
    %v548 = vpop.permute.xlu0 %547
    %550 = vset.pattern.permute.xlu0 1
    %551 = vperm.xlu0 %550, %v44
    %v552 = vpop.permute.xlu0 %551
    %554 = vmatprep.subr.mxu0 0.0
    %555 = vmatpush1.msra.mxu0 %v457
    %556 = vmatprep.subr.mxu0 0.0
    %557 = vmatpush1.msra.mxu0 %v458
    %558 = vmatprep.subr.mxu0 0.0
    %559 = vmatpush1.msra.mxu0 %v459
    %560 = vmatprep.subr.mxu0 0.0
    %561 = vmatpush1.msra.mxu0 %v460
    %562 = vmatprep.subr.mxu0 0.0
    %563 = vmatpush1.msra.mxu0 %v461
    %564 = vmatprep.subr.mxu0 0.0
    %565 = vmatpush1.msra.mxu0 %v462
    %566 = vmatprep.subr.mxu0 0.0
    %567 = vmatpush1.msra.mxu0 %v463
    %568 = vmatprep.subr.mxu0 0.0
    %569 = vmatpush1.msra.mxu0 %v464
    %570 = vmatprep.subr.mxu0 0.0
    %571 = vmatpush1.msra.mxu0 %v465
    %572 = vmatprep.subr.mxu0 0.0
    %573 = vmatpush1.msra.mxu0 %v466
    %574 = vmatprep.subr.mxu0 0.0
    %575 = vmatpush1.msra.mxu0 %v467
    %576 = vmatprep.subr.mxu0 0.0
    %577 = vmatpush1.msra.mxu0 %v468
    %578 = vmatprep.subr.mxu0 0.0
    %579 = vmatpush1.msra.mxu0 %v469
    %580 = vmatprep.subr.mxu0 0.0
    %581 = vmatpush1.msra.mxu0 %v470
    %582 = vmatprep.subr.mxu0 0.0
    %583 = vmatpush1.msra.mxu0 %v471
    %584 = vmatprep.subr.mxu0 0.0
    %585 = vmatpush1.msra.mxu0 %v472
    %586 = vmatprep.subr.mxu0 0.0
    %587 = vmatpush1.msra.mxu0 0.0
    %588 = vmatprep.subr.mxu0 0.0
    %589 = vmatpush1.msra.mxu0 0.0
    %590 = vmatprep.subr.mxu0 0.0
    %591 = vmatpush1.msra.mxu0 0.0
    %592 = vmatprep.subr.mxu0 0.0
    %593 = vmatpush1.msra.mxu0 0.0
    %594 = vmatprep.subr.mxu0 0.0
    %595 = vmatpush1.msra.mxu0 0.0
    %596 = vmatprep.subr.mxu0 0.0
    %597 = vmatpush1.msra.mxu0 0.0
    %598 = vmatprep.subr.mxu0 0.0
    %599 = vmatpush1.msra.mxu0 0.0
    %600 = vmatprep.subr.mxu0 0.0
    %601 = vmatpush1.msra.mxu0 0.0
    %602 = vmatprep.subr.mxu0 0.0
    %603 = vmatpush1.msra.mxu0 0.0
    %604 = vmatprep.subr.mxu0 0.0
    %605 = vmatpush1.msra.mxu0 0.0
    %606 = vmatprep.subr.mxu0 0.0
    %607 = vmatpush1.msra.mxu0 0.0
    %608 = vmatprep.subr.mxu0 0.0
    %609 = vmatpush1.msra.mxu0 0.0
    %610 = vmatprep.subr.mxu0 0.0
    %611 = vmatpush1.msra.mxu0 0.0
    %612 = vmatprep.subr.mxu0 0.0
    %613 = vmatpush1.msra.mxu0 0.0
    %614 = vmatprep.subr.mxu0 0.0
    %615 = vmatpush1.msra.mxu0 0.0
    %616 = vmatprep.subr.mxu0 0.0
    %617 = vmatpush1.msra.mxu0 0.0
    %618 = vmatprep.mubr.f32.mxu0 0.0
    %619 = vmatmul.mubr.f32.gmra.mrb[0].mxu0 %v474
    %v620 = vpop.f32.mrb[0].mxu0
    %v621 = vadd.f32 %v492, %v620
    %v622 = vpop.f32.mrb[0].mxu0
    %623 = vmatprep.mubr.f32.mxu0 0.0
    %624 = vmatmul.mubr.f32.gmra.mrb[0].mxu0 %v475
    %v625 = vpop.f32.mrb[0].mxu0
    %v626 = vadd.f32 %v496, %v625
    %v627 = vpop.f32.mrb[0].mxu0
    %628 = vmatprep.mubr.f32.mxu0 0.0
    %629 = vmatmul.mubr.f32.gmra.mrb[0].mxu0 %v476
    %v630 = vpop.f32.mrb[0].mxu0
    %v631 = vadd.f32 %v500, %v630
    %v632 = vpop.f32.mrb[0].mxu0
    %633 = vmatprep.mubr.f32.mxu0 0.0
    %634 = vmatmul.mubr.f32.gmra.mrb[0].mxu0 %v477
    %v635 = vpop.f32.mrb[0].mxu0
    %v636 = vadd.f32 %v504, %v635
    %v637 = vpop.f32.mrb[0].mxu0
    %638 = vmatprep.mubr.f32.mxu0 0.0
    %639 = vmatmul.mubr.f32.gmra.mrb[0].mxu0 %v478
    %v640 = vpop.f32.mrb[0].mxu0
    %v641 = vadd.f32 %v508, %v640
    %v642 = vpop.f32.mrb[0].mxu0
    %643 = vmatprep.mubr.f32.mxu0 0.0
    %644 = vmatmul.mubr.f32.gmra.mrb[0].mxu0 %v479
    %v645 = vpop.f32.mrb[0].mxu0
    %v646 = vadd.f32 %v512, %v645
    %v647 = vpop.f32.mrb[0].mxu0
    %648 = vmatprep.mubr.f32.mxu0 0.0
    %649 = vmatmul.mubr.f32.gmra.mrb[0].mxu0 %v480
    %v650 = vpop.f32.mrb[0].mxu0
    %v651 = vadd.f32 %v516, %v650
    %v652 = vpop.f32.mrb[0].mxu0
    %653 = vmatprep.mubr.f32.mxu0 0.0
    %654 = vmatmul.mubr.f32.gmra.mrb[0].mxu0 %v481
    %v655 = vpop.f32.mrb[0].mxu0
    %v656 = vadd.f32 %v520, %v655
    %v657 = vpop.f32.mrb[0].mxu0
    %658 = vmatprep.mubr.f32.mxu0 0.0
    %659 = vmatmul.mubr.f32.gmra.mrb[0].mxu0 %v482
    %v660 = vpop.f32.mrb[0].mxu0
    %v661 = vadd.f32 %v524, %v660
    %v662 = vpop.f32.mrb[0].mxu0
    %663 = vmatprep.mubr.f32.mxu0 0.0
    %664 = vmatmul.mubr.f32.gmra.mrb[0].mxu0 %v483
    %v665 = vpop.f32.mrb[0].mxu0
    %v666 = vadd.f32 %v528, %v665
    %v667 = vpop.f32.mrb[0].mxu0
    %668 = vmatprep.mubr.f32.mxu0 0.0
    %669 = vmatmul.mubr.f32.gmra.mrb[0].mxu0 %v484
    %v670 = vpop.f32.mrb[0].mxu0
    %v671 = vadd.f32 %v532, %v670
    %v672 = vpop.f32.mrb[0].mxu0
    %673 = vmatprep.mubr.f32.mxu0 0.0
    %674 = vmatmul.mubr.f32.gmra.mrb[0].mxu0 %v485
    %v675 = vpop.f32.mrb[0].mxu0
    %v676 = vadd.f32 %v536, %v675
    %v677 = vpop.f32.mrb[0].mxu0
    %678 = vmatprep.mubr.f32.mxu0 0.0
    %679 = vmatmul.mubr.f32.gmra.mrb[0].mxu0 %v486
    %v680 = vpop.f32.mrb[0].mxu0
    %v681 = vadd.f32 %v540, %v680
    %v682 = vpop.f32.mrb[0].mxu0
    %683 = vmatprep.mubr.f32.mxu0 0.0
    %684 = vmatmul.mubr.f32.gmra.mrb[0].mxu0 %v487
    %v685 = vpop.f32.mrb[0].mxu0
    %v686 = vadd.f32 %v544, %v685
    %v687 = vpop.f32.mrb[0].mxu0
    %688 = vmatprep.mubr.f32.mxu0 0.0
    %689 = vmatmul.mubr.f32.gmra.mrb[0].mxu0 %v488
    %v690 = vpop.f32.mrb[0].mxu0
    %v691 = vadd.f32 %v548, %v690
    %v692 = vpop.f32.mrb[0].mxu0
    %693 = vmatprep.mubr.f32.mxu0 0.0
    %694 = vmatmul.mubr.f32.gmra.mrb[0].mxu0 %v489
    %v695 = vpop.f32.mrb[0].mxu0
    %v696 = vadd.f32 %v552, %v695
    %v697 = vpop.f32.mrb[0].mxu0
    %698 = vdwg.mxu0
    %v699 = vmax.f32 %v621, 0.0
    %v700 = vmax.f32 %v626, 0.0
    %v701 = vmax.f32 %v631, 0.0
    %v702 = vmax.f32 %v636, 0.0
    %v703 = vmax.f32 %v641, 0.0
    %v704 = vmax.f32 %v646, 0.0
    %v705 = vmax.f32 %v651, 0.0
    %v706 = vmax.f32 %v656, 0.0
    %v707 = vmax.f32 %v661, 0.0
    %v708 = vmax.f32 %v666, 0.0
    %v709 = vmax.f32 %v671, 0.0
    %v710 = vmax.f32 %v676, 0.0
    %v711 = vmax.f32 %v681, 0.0
    %v712 = vmax.f32 %v686, 0.0
    %v713 = vmax.f32 %v691, 0.0
    %v714 = vmax.f32 %v696, 0.0
    %s715 = scalar_lea.vmem [#allocation2], 256
    %v716 = vld [vmem:[%s715] sm:$0xff]
    %v717 = vld [vmem:[%s715 + $0x8] sm:$0xff]
    %v718 = vld [vmem:[%s715 + $0x10] sm:$0xff]
    %v719 = vld [vmem:[%s715 + $0x18] sm:$0xff]
    %v720 = vld [vmem:[%s715 + $0x20] sm:$0xff]
    %v721 = vld [vmem:[%s715 + $0x28] sm:$0xff]
    %v722 = vld [vmem:[%s715 + $0x30] sm:$0xff]
    %v723 = vld [vmem:[%s715 + $0x38] sm:$0xff]
    %v724 = vld [vmem:[%s715 + $0x40] sm:$0xff]
    %v725 = vld [vmem:[%s715 + $0x48] sm:$0xff]
    %v726 = vld [vmem:[%s715 + $0x50] sm:$0xff]
    %v727 = vld [vmem:[%s715 + $0x58] sm:$0xff]
    %v728 = vld [vmem:[%s715 + $0x60] sm:$0xff]
    %v729 = vld [vmem:[%s715 + $0x68] sm:$0xff]
    %v730 = vld [vmem:[%s715 + $0x70] sm:$0xff]
    %v731 = vld [vmem:[%s715 + $0x78] sm:$0xff]
    %732 = vset.pattern.permute.xlu0 2
    %733 = vperm.xlu0 %732, %v29
    %v734 = vpop.permute.xlu0 %733
    %736 = vset.pattern.permute.xlu0 2
    %737 = vperm.xlu0 %736, %v30
    %v738 = vpop.permute.xlu0 %737
    %740 = vset.pattern.permute.xlu0 2
    %741 = vperm.xlu0 %740, %v31
    %v742 = vpop.permute.xlu0 %741
    %744 = vset.pattern.permute.xlu0 2
    %745 = vperm.xlu0 %744, %v32
    %v746 = vpop.permute.xlu0 %745
    %748 = vset.pattern.permute.xlu0 2
    %749 = vperm.xlu0 %748, %v33
    %v750 = vpop.permute.xlu0 %749
    %752 = vset.pattern.permute.xlu0 2
    %753 = vperm.xlu0 %752, %v34
    %v754 = vpop.permute.xlu0 %753
    %756 = vset.pattern.permute.xlu0 2
    %757 = vperm.xlu0 %756, %v35
    %v758 = vpop.permute.xlu0 %757
    %760 = vset.pattern.permute.xlu0 2
    %761 = vperm.xlu0 %760, %v36
    %v762 = vpop.permute.xlu0 %761
    %764 = vset.pattern.permute.xlu0 2
    %765 = vperm.xlu0 %764, %v37
    %v766 = vpop.permute.xlu0 %765
    %768 = vset.pattern.permute.xlu0 2
    %769 = vperm.xlu0 %768, %v38
    %v770 = vpop.permute.xlu0 %769
    %772 = vset.pattern.permute.xlu0 2
    %773 = vperm.xlu0 %772, %v39
    %v774 = vpop.permute.xlu0 %773
    %776 = vset.pattern.permute.xlu0 2
    %777 = vperm.xlu0 %776, %v40
    %v778 = vpop.permute.xlu0 %777
    %780 = vset.pattern.permute.xlu0 2
    %781 = vperm.xlu0 %780, %v41
    %v782 = vpop.permute.xlu0 %781
    %784 = vset.pattern.permute.xlu0 2
    %785 = vperm.xlu0 %784, %v42
    %v786 = vpop.permute.xlu0 %785
    %788 = vset.pattern.permute.xlu0 2
    %789 = vperm.xlu0 %788, %v43
    %v790 = vpop.permute.xlu0 %789
    %792 = vset.pattern.permute.xlu0 2
    %793 = vperm.xlu0 %792, %v44
    %v794 = vpop.permute.xlu0 %793
    %796 = vmatprep.subr.mxu0 0.0
    %797 = vmatpush1.msra.mxu0 %v699
    %798 = vmatprep.subr.mxu0 0.0
    %799 = vmatpush1.msra.mxu0 %v700
    %800 = vmatprep.subr.mxu0 0.0
    %801 = vmatpush1.msra.mxu0 %v701
    %802 = vmatprep.subr.mxu0 0.0
    %803 = vmatpush1.msra.mxu0 %v702
    %804 = vmatprep.subr.mxu0 0.0
    %805 = vmatpush1.msra.mxu0 %v703
    %806 = vmatprep.subr.mxu0 0.0
    %807 = vmatpush1.msra.mxu0 %v704
    %808 = vmatprep.subr.mxu0 0.0
    %809 = vmatpush1.msra.mxu0 %v705
    %810 = vmatprep.subr.mxu0 0.0
    %811 = vmatpush1.msra.mxu0 %v706
    %812 = vmatprep.subr.mxu0 0.0
    %813 = vmatpush1.msra.mxu0 %v707
    %814 = vmatprep.subr.mxu0 0.0
    %815 = vmatpush1.msra.mxu0 %v708
    %816 = vmatprep.subr.mxu0 0.0
    %817 = vmatpush1.msra.mxu0 %v709
    %818 = vmatprep.subr.mxu0 0.0
    %819 = vmatpush1.msra.mxu0 %v710
    %820 = vmatprep.subr.mxu0 0.0
    %821 = vmatpush1.msra.mxu0 %v711
    %822 = vmatprep.subr.mxu0 0.0
    %823 = vmatpush1.msra.mxu0 %v712
    %824 = vmatprep.subr.mxu0 0.0
    %825 = vmatpush1.msra.mxu0 %v713
    %826 = vmatprep.subr.mxu0 0.0
    %827 = vmatpush1.msra.mxu0 %v714
    %828 = vmatprep.subr.mxu0 0.0
    %829 = vmatpush1.msra.mxu0 0.0
    %830 = vmatprep.subr.mxu0 0.0
    %831 = vmatpush1.msra.mxu0 0.0
    %832 = vmatprep.subr.mxu0 0.0
    %833 = vmatpush1.msra.mxu0 0.0
    %834 = vmatprep.subr.mxu0 0.0
    %835 = vmatpush1.msra.mxu0 0.0
    %836 = vmatprep.subr.mxu0 0.0
    %837 = vmatpush1.msra.mxu0 0.0
    %838 = vmatprep.subr.mxu0 0.0
    %839 = vmatpush1.msra.mxu0 0.0
    %840 = vmatprep.subr.mxu0 0.0
    %841 = vmatpush1.msra.mxu0 0.0
    %842 = vmatprep.subr.mxu0 0.0
    %843 = vmatpush1.msra.mxu0 0.0
    %844 = vmatprep.subr.mxu0 0.0
    %845 = vmatpush1.msra.mxu0 0.0
    %846 = vmatprep.subr.mxu0 0.0
    %847 = vmatpush1.msra.mxu0 0.0
    %848 = vmatprep.subr.mxu0 0.0
    %849 = vmatpush1.msra.mxu0 0.0
    %850 = vmatprep.subr.mxu0 0.0
    %851 = vmatpush1.msra.mxu0 0.0
    %852 = vmatprep.subr.mxu0 0.0
    %853 = vmatpush1.msra.mxu0 0.0
    %854 = vmatprep.subr.mxu0 0.0
    %855 = vmatpush1.msra.mxu0 0.0
    %856 = vmatprep.subr.mxu0 0.0
    %857 = vmatpush1.msra.mxu0 0.0
    %858 = vmatprep.subr.mxu0 0.0
    %859 = vmatpush1.msra.mxu0 0.0
    %860 = vmatprep.mubr.f32.mxu0 0.0
    %861 = vmatmul.mubr.f32.gmra.mrb[0].mxu0 %v716
    %v862 = vpop.f32.mrb[0].mxu0
    %v863 = vadd.f32 %v734, %v862
    %v864 = vpop.f32.mrb[0].mxu0
    %865 = vmatprep.mubr.f32.mxu0 0.0
    %866 = vmatmul.mubr.f32.gmra.mrb[0].mxu0 %v717
    %v867 = vpop.f32.mrb[0].mxu0
    %v868 = vadd.f32 %v738, %v867
    %v869 = vpop.f32.mrb[0].mxu0
    %870 = vmatprep.mubr.f32.mxu0 0.0
    %871 = vmatmul.mubr.f32.gmra.mrb[0].mxu0 %v718
    %v872 = vpop.f32.mrb[0].mxu0
    %v873 = vadd.f32 %v742, %v872
    %v874 = vpop.f32.mrb[0].mxu0
    %875 = vmatprep.mubr.f32.mxu0 0.0
    %876 = vmatmul.mubr.f32.gmra.mrb[0].mxu0 %v719
    %v877 = vpop.f32.mrb[0].mxu0
    %v878 = vadd.f32 %v746, %v877
    %v879 = vpop.f32.mrb[0].mxu0
    %880 = vmatprep.mubr.f32.mxu0 0.0
    %881 = vmatmul.mubr.f32.gmra.mrb[0].mxu0 %v720
    %v882 = vpop.f32.mrb[0].mxu0
    %v883 = vadd.f32 %v750, %v882
    %v884 = vpop.f32.mrb[0].mxu0
    %885 = vmatprep.mubr.f32.mxu0 0.0
    %886 = vmatmul.mubr.f32.gmra.mrb[0].mxu0 %v721
    %v887 = vpop.f32.mrb[0].mxu0
    %v888 = vadd.f32 %v754, %v887
    %v889 = vpop.f32.mrb[0].mxu0
    %890 = vmatprep.mubr.f32.mxu0 0.0
    %891 = vmatmul.mubr.f32.gmra.mrb[0].mxu0 %v722
    %v892 = vpop.f32.mrb[0].mxu0
    %v893 = vadd.f32 %v758, %v892
    %v894 = vpop.f32.mrb[0].mxu0
    %895 = vmatprep.mubr.f32.mxu0 0.0
    %896 = vmatmul.mubr.f32.gmra.mrb[0].mxu0 %v723
    %v897 = vpop.f32.mrb[0].mxu0
    %v898 = vadd.f32 %v762, %v897
    %v899 = vpop.f32.mrb[0].mxu0
    %900 = vmatprep.mubr.f32.mxu0 0.0
    %901 = vmatmul.mubr.f32.gmra.mrb[0].mxu0 %v724
    %v902 = vpop.f32.mrb[0].mxu0
    %v903 = vadd.f32 %v766, %v902
    %v904 = vpop.f32.mrb[0].mxu0
    %905 = vmatprep.mubr.f32.mxu0 0.0
    %906 = vmatmul.mubr.f32.gmra.mrb[0].mxu0 %v725
    %v907 = vpop.f32.mrb[0].mxu0
    %v908 = vadd.f32 %v770, %v907
    %v909 = vpop.f32.mrb[0].mxu0
    %910 = vmatprep.mubr.f32.mxu0 0.0
    %911 = vmatmul.mubr.f32.gmra.mrb[0].mxu0 %v726
    %v912 = vpop.f32.mrb[0].mxu0
    %v913 = vadd.f32 %v774, %v912
    %v914 = vpop.f32.mrb[0].mxu0
    %915 = vmatprep.mubr.f32.mxu0 0.0
    %916 = vmatmul.mubr.f32.gmra.mrb[0].mxu0 %v727
    %v917 = vpop.f32.mrb[0].mxu0
    %v918 = vadd.f32 %v778, %v917
    %v919 = vpop.f32.mrb[0].mxu0
    %920 = vmatprep.mubr.f32.mxu0 0.0
    %921 = vmatmul.mubr.f32.gmra.mrb[0].mxu0 %v728
    %v922 = vpop.f32.mrb[0].mxu0
    %v923 = vadd.f32 %v782, %v922
    %v924 = vpop.f32.mrb[0].mxu0
    %925 = vmatprep.mubr.f32.mxu0 0.0
    %926 = vmatmul.mubr.f32.gmra.mrb[0].mxu0 %v729
    %v927 = vpop.f32.mrb[0].mxu0
    %v928 = vadd.f32 %v786, %v927
    %v929 = vpop.f32.mrb[0].mxu0
    %930 = vmatprep.mubr.f32.mxu0 0.0
    %931 = vmatmul.mubr.f32.gmra.mrb[0].mxu0 %v730
    %v932 = vpop.f32.mrb[0].mxu0
    %v933 = vadd.f32 %v790, %v932
    %v934 = vpop.f32.mrb[0].mxu0
    %935 = vmatprep.mubr.f32.mxu0 0.0
    %936 = vmatmul.mubr.f32.gmra.mrb[0].mxu0 %v731
    %v937 = vpop.f32.mrb[0].mxu0
    %v938 = vadd.f32 %v794, %v937
    %v939 = vpop.f32.mrb[0].mxu0
    %940 = vdwg.mxu0
    %v941 = vmax.f32 %v863, 0.0
    %v942 = vmax.f32 %v868, 0.0
    %v943 = vmax.f32 %v873, 0.0
    %v944 = vmax.f32 %v878, 0.0
    %v945 = vmax.f32 %v883, 0.0
    %v946 = vmax.f32 %v888, 0.0
    %v947 = vmax.f32 %v893, 0.0
    %v948 = vmax.f32 %v898, 0.0
    %v949 = vmax.f32 %v903, 0.0
    %v950 = vmax.f32 %v908, 0.0
    %v951 = vmax.f32 %v913, 0.0
    %v952 = vmax.f32 %v918, 0.0
    %v953 = vmax.f32 %v923, 0.0
    %v954 = vmax.f32 %v928, 0.0
    %v955 = vmax.f32 %v933, 0.0
    %v956 = vmax.f32 %v938, 0.0
    %s957 = scalar_lea.vmem [#allocation2], 384
    %v958 = vld [vmem:[%s957] sm:$0xff]
    %v959 = vld [vmem:[%s957 + $0x8] sm:$0xff]
    %v960 = vld [vmem:[%s957 + $0x10] sm:$0xff]
    %v961 = vld [vmem:[%s957 + $0x18] sm:$0xff]
    %v962 = vld [vmem:[%s957 + $0x20] sm:$0xff]
    %v963 = vld [vmem:[%s957 + $0x28] sm:$0xff]
    %v964 = vld [vmem:[%s957 + $0x30] sm:$0xff]
    %v965 = vld [vmem:[%s957 + $0x38] sm:$0xff]
    %v966 = vld [vmem:[%s957 + $0x40] sm:$0xff]
    %v967 = vld [vmem:[%s957 + $0x48] sm:$0xff]
    %v968 = vld [vmem:[%s957 + $0x50] sm:$0xff]
    %v969 = vld [vmem:[%s957 + $0x58] sm:$0xff]
    %v970 = vld [vmem:[%s957 + $0x60] sm:$0xff]
    %v971 = vld [vmem:[%s957 + $0x68] sm:$0xff]
    %v972 = vld [vmem:[%s957 + $0x70] sm:$0xff]
    %v973 = vld [vmem:[%s957 + $0x78] sm:$0xff]
    %974 = vmatprep.subr.mxu0 0.0
    %975 = vmatpush1.msra.mxu0 %v941
    %976 = vmatprep.subr.mxu0 0.0
    %977 = vmatpush1.msra.mxu0 %v942
    %978 = vmatprep.subr.mxu0 0.0
    %979 = vmatpush1.msra.mxu0 %v943
    %980 = vmatprep.subr.mxu0 0.0
    %981 = vmatpush1.msra.mxu0 %v944
    %982 = vmatprep.subr.mxu0 0.0
    %983 = vmatpush1.msra.mxu0 %v945
    %984 = vmatprep.subr.mxu0 0.0
    %985 = vmatpush1.msra.mxu0 %v946
    %986 = vmatprep.subr.mxu0 0.0
    %987 = vmatpush1.msra.mxu0 %v947
    %988 = vmatprep.subr.mxu0 0.0
    %989 = vmatpush1.msra.mxu0 %v948
    %990 = vmatprep.subr.mxu0 0.0
    %991 = vmatpush1.msra.mxu0 %v949
    %992 = vmatprep.subr.mxu0 0.0
    %993 = vmatpush1.msra.mxu0 %v950
    %994 = vmatprep.subr.mxu0 0.0
    %995 = vmatpush1.msra.mxu0 %v951
    %996 = vmatprep.subr.mxu0 0.0
    %997 = vmatpush1.msra.mxu0 %v952
    %998 = vmatprep.subr.mxu0 0.0
    %999 = vmatpush1.msra.mxu0 %v953
    %1000 = vmatprep.subr.mxu0 0.0
    %1001 = vmatpush1.msra.mxu0 %v954
    %1002 = vmatprep.subr.mxu0 0.0
    %1003 = vmatpush1.msra.mxu0 %v955
    %1004 = vmatprep.subr.mxu0 0.0
    %1005 = vmatpush1.msra.mxu0 %v956
    %1006 = vmatprep.subr.mxu0 0.0
    %1007 = vmatpush1.msra.mxu0 0.0
    %1008 = vmatprep.subr.mxu0 0.0
    %1009 = vmatpush1.msra.mxu0 0.0
    %1010 = vmatprep.subr.mxu0 0.0
    %1011 = vmatpush1.msra.mxu0 0.0
    %1012 = vmatprep.subr.mxu0 0.0
    %1013 = vmatpush1.msra.mxu0 0.0
    %1014 = vmatprep.subr.mxu0 0.0
    %1015 = vmatpush1.msra.mxu0 0.0
    %1016 = vmatprep.subr.mxu0 0.0
    %1017 = vmatpush1.msra.mxu0 0.0
    %1018 = vmatprep.subr.mxu0 0.0
    %1019 = vmatpush1.msra.mxu0 0.0
    %1020 = vmatprep.subr.mxu0 0.0
    %1021 = vmatpush1.msra.mxu0 0.0
    %1022 = vmatprep.subr.mxu0 0.0
    %1023 = vmatpush1.msra.mxu0 0.0
    %1024 = vmatprep.subr.mxu0 0.0
    %1025 = vmatpush1.msra.mxu0 0.0
    %1026 = vmatprep.subr.mxu0 0.0
    %1027 = vmatpush1.msra.mxu0 0.0
    %1028 = vmatprep.subr.mxu0 0.0
    %1029 = vmatpush1.msra.mxu0 0.0
    %1030 = vmatprep.subr.mxu0 0.0
    %1031 = vmatpush1.msra.mxu0 0.0
    %1032 = vmatprep.subr.mxu0 0.0
    %1033 = vmatpush1.msra.mxu0 0.0
    %1034 = vmatprep.subr.mxu0 0.0
    %1035 = vmatpush1.msra.mxu0 0.0
    %1036 = vmatprep.subr.mxu0 0.0
    %1037 = vmatpush1.msra.mxu0 0.0
    %1038 = vmatprep.mubr.f32.mxu0 0.0
    %1039 = vmatmul.mubr.f32.gmra.mrb[0].mxu0 %v958
    %v1040 = vpop.f32.mrb[0].mxu0
    %v1041 = vadd.f32 0.0, %v1040
    %v1042 = vpop.f32.mrb[0].mxu0
    %1043 = vmatprep.mubr.f32.mxu0 0.0
    %1044 = vmatmul.mubr.f32.gmra.mrb[0].mxu0 %v959
    %v1045 = vpop.f32.mrb[0].mxu0
    %v1046 = vpop.f32.mrb[0].mxu0
    %1047 = vmatprep.mubr.f32.mxu0 0.0
    %1048 = vmatmul.mubr.f32.gmra.mrb[0].mxu0 %v960
    %v1049 = vpop.f32.mrb[0].mxu0
    %v1050 = vpop.f32.mrb[0].mxu0
    %1051 = vmatprep.mubr.f32.mxu0 0.0
    %1052 = vmatmul.mubr.f32.gmra.mrb[0].mxu0 %v961
    %v1053 = vpop.f32.mrb[0].mxu0
    %v1054 = vpop.f32.mrb[0].mxu0
    %1055 = vmatprep.mubr.f32.mxu0 0.0
    %1056 = vmatmul.mubr.f32.gmra.mrb[0].mxu0 %v962
    %v1057 = vpop.f32.mrb[0].mxu0
    %v1058 = vpop.f32.mrb[0].mxu0
    %1059 = vmatprep.mubr.f32.mxu0 0.0
    %1060 = vmatmul.mubr.f32.gmra.mrb[0].mxu0 %v963
    %v1061 = vpop.f32.mrb[0].mxu0
    %v1062 = vpop.f32.mrb[0].mxu0
    %1063 = vmatprep.mubr.f32.mxu0 0.0
    %1064 = vmatmul.mubr.f32.gmra.mrb[0].mxu0 %v964
    %v1065 = vpop.f32.mrb[0].mxu0
    %v1066 = vpop.f32.mrb[0].mxu0
    %1067 = vmatprep.mubr.f32.mxu0 0.0
    %1068 = vmatmul.mubr.f32.gmra.mrb[0].mxu0 %v965
    %v1069 = vpop.f32.mrb[0].mxu0
    %v1070 = vpop.f32.mrb[0].mxu0
    %1071 = vmatprep.mubr.f32.mxu0 0.0
    %1072 = vmatmul.mubr.f32.gmra.mrb[0].mxu0 %v966
    %v1073 = vpop.f32.mrb[0].mxu0
    %v1074 = vpop.f32.mrb[0].mxu0
    %1075 = vmatprep.mubr.f32.mxu0 0.0
    %1076 = vmatmul.mubr.f32.gmra.mrb[0].mxu0 %v967
    %v1077 = vpop.f32.mrb[0].mxu0
    %v1078 = vpop.f32.mrb[0].mxu0
    %1079 = vmatprep.mubr.f32.mxu0 0.0
    %1080 = vmatmul.mubr.f32.gmra.mrb[0].mxu0 %v968
    %v1081 = vpop.f32.mrb[0].mxu0
    %v1082 = vpop.f32.mrb[0].mxu0
    %1083 = vmatprep.mubr.f32.mxu0 0.0
    %1084 = vmatmul.mubr.f32.gmra.mrb[0].mxu0 %v969
    %v1085 = vpop.f32.mrb[0].mxu0
    %v1086 = vpop.f32.mrb[0].mxu0
    %1087 = vmatprep.mubr.f32.mxu0 0.0
    %1088 = vmatmul.mubr.f32.gmra.mrb[0].mxu0 %v970
    %v1089 = vpop.f32.mrb[0].mxu0
    %v1090 = vpop.f32.mrb[0].mxu0
    %1091 = vmatprep.mubr.f32.mxu0 0.0
    %1092 = vmatmul.mubr.f32.gmra.mrb[0].mxu0 %v971
    %v1093 = vpop.f32.mrb[0].mxu0
    %v1094 = vpop.f32.mrb[0].mxu0
    %1095 = vmatprep.mubr.f32.mxu0 0.0
    %1096 = vmatmul.mubr.f32.gmra.mrb[0].mxu0 %v972
    %v1097 = vpop.f32.mrb[0].mxu0
    %v1098 = vpop.f32.mrb[0].mxu0
    %1099 = vmatprep.mubr.f32.mxu0 0.0
    %1100 = vmatmul.mubr.f32.gmra.mrb[0].mxu0 %v973
    %v1101 = vpop.f32.mrb[0].mxu0
    %v1102 = vpop.f32.mrb[0].mxu0
    %1103 = vdwg.mxu0
    %1104 = vset.pattern.permute.xlu0 3
    %1105 = vperm.xlu0 %1104, %v29
    %v1106 = vpop.permute.xlu0 %1105
    %v1108 = vadd.f32 %v1041, %v1106
    %1109 = vst [vmem:[%s3] sm:$0x1] %v1108
    // Predicated region
    $region18: #{simple_net_forward.1} parent=1 // pred_check
      _
    $region19: #{simple_net_forward.1} parent=1 // pred_check_branch
      %1111 = sbr.rel (0) target = $region21
    $region20: #{simple_net_forward.1} parent=1 // pred_region
      _
    $region21: #{simple_net_forward.1} parent=1 // pred_fallthru
      _
    // Predicated region
    $region22: #{simple_net_forward.1} parent=1 // pred_check
      _
    $region23: #{simple_net_forward.1} parent=1 // pred_check_branch
      %1113 = sbr.rel (0) target = $region25
    $region24: #{simple_net_forward.1} parent=1 // pred_region
      _
    $region25: #{simple_net_forward.1} parent=1 // pred_fallthru
      _
    %1114 = vsyncpa [#allocation3], 1

</llo_original>
